<compile_context>
chip_gen: v7x
topology: tpu7x:2x2x1
jax: 0.10.0
libtpu: 0.0.40
codegen_flags: <defaults>
</compile_context>

<pallas_src>
import functools

import jax
import jax.numpy as jnp
from jax.experimental import pallas as pl
from jax.experimental.pallas import tpu as pltpu


def _round_up(n, m):
    return ((n + m - 1) // m) * m


def _cdiv(a, b):
    return (a + b - 1) // b


def _pad2(a, rows, cols):
    r, c = a.shape
    if r == rows and c == cols:
        return a
    return jnp.pad(a, ((0, rows - r), (0, cols - c)))


def _device_kind():
    try:
        return jax.devices()[0].device_kind.lower()
    except Exception:
        return ""


def rbm_kernel(x_ref, w_ref, b_ref, h_ref, xr_ref, hr_ref, *, n_sub):
    w = w_ref[...]          # (pH, pV) compute dtype, VMEM-resident across the grid
    b = b_ref[...]          # (1,  pH) f32

    # Contract over the shared last (V) dim: (m, V) . (H, V) -> (m, H).
    # No W.T is ever materialized (no XLU transpose of the W tile).
    dn_nt = (((1,), (1,)), ((), ()))
    # (m, H) . (H, V) -> (m, V)
    dn_nn = (((1,), (0,)), ((), ()))

    tb = x_ref.shape[0]
    sub = tb // n_sub
    # Unrolled independent sub-tiles: the scheduler can hide one sub-tile's
    # bias-add + sigmoid (VPU/EUP) under the other's MXU matmuls.
    for s in range(n_sub):
        rows = pl.ds(s * sub, sub)
        x = x_ref[rows, :]

        # h = sigmoid(x @ W^T + b)     (f32 accumulate, f32 epilogue)
        pre_h = jax.lax.dot_general(
            x, w, dn_nt, preferred_element_type=jnp.float32) + b
        h = jax.nn.sigmoid(pre_h)

        # x_rec = h @ W
        x_rec = jax.lax.dot_general(
            h.astype(w.dtype), w, dn_nn, preferred_element_type=jnp.float32)

        # h_rec = sigmoid(x_rec @ W^T + b)
        # (x_rec is re-cast to the compute dtype here: two bf16 roundings in
        #  series on the bf16 path; use compute_dtype=f32 if that matters.)
        pre_hr = jax.lax.dot_general(
            x_rec.astype(w.dtype), w, dn_nt, preferred_element_type=jnp.float32) + b
        h_rec = jax.nn.sigmoid(pre_hr)

        # NOTE: padded hidden columns (H..pH) of h evaluate to sigmoid(0)=0.5.
        # This is exact for the returned values: the matching W rows and bias
        # entries are zero (so they contribute nothing to x_rec / h_rec) and
        # the padded columns are sliced off by the wrapper.
        h_ref[rows, :] = h.astype(h_ref.dtype)
        xr_ref[rows, :] = x_rec.astype(xr_ref.dtype)
        hr_ref[rows, :] = h_rec.astype(hr_ref.dtype)


def _resident_spec(shape, single_buffer):
    """BlockSpec for an operand whose block never changes across the grid."""
    index_map = lambda i: (0,) * len(shape)
    if single_buffer:
        try:
            return pl.BlockSpec(shape, index_map, pipeline_mode=pl.Buffered(1))
        except Exception:
            pass  # older jax without pipeline_mode: fall back to default buffering
    return pl.BlockSpec(shape, index_map)


@functools.partial(
    jax.jit,
    static_argnames=("compute_dtype", "out_dtype", "block_b", "single_buffer_resident"))
def rbm_forward(x, w, b, *, compute_dtype=jnp.bfloat16, out_dtype=None,
                block_b=None, single_buffer_resident=True):
    """x: (B, V), w: (H, V) (torch Linear layout), b: (H,).

    Returns (h, x_rec, h_rec) in `out_dtype` (defaults to x.dtype).
    """
    B, V = x.shape
    H, V2 = w.shape
    assert V == V2 and b.shape == (H,)
    out_dtype = jnp.dtype(out_dtype) if out_dtype is not None else x.dtype
    c_dtype = jnp.dtype(compute_dtype)
    c_isz = c_dtype.itemsize
    o_isz = jnp.dtype(out_dtype).itemsize

    kind = _device_kind()
    is_v5 = "v5" in kind
    is_v7 = "v7" in kind

    # MXU-facing padding: v6e/v7x MXU passes are 256 wide, so 256-align dims
    # that are already >=256; v5e's 4x128x128 MXU is saturated at 128.
    def mxu_pad(n):
        if (not is_v5) and n >= 256:
            return _round_up(n, 256)
        return _round_up(n, 128)

    pV = mxu_pad(V)
    pH = mxu_pad(H)

    # Sublane packing for the batch tile: bf16 packs (16,128) per vreg.
    row_align = 8 * max(1, 4 // c_isz)

    if block_b is None:
        block_b = 256 if is_v7 else 512          # v7x: 64 MiB VMEM -> smaller tile
    tb = _round_up(B, row_align) if B <= block_b else block_b

    # v7x has 2 TensorCores: give the ("parallel",) batch grid >=2 steps when
    # the batch is large enough, so both cores get work.
    if is_v7 and B >= 2 * row_align and _round_up(B, tb) // tb < 2:
        tb = _round_up(_cdiv(B, 2), row_align)

    # VMEM accounting: resident W/b + double-buffered x & outputs + f32
    # intermediates. Shrink the batch tile if the estimate exceeds the budget.
    vmem_cap = (56 << 20) if is_v7 else (100 << 20)
    w_bufs = 1 if single_buffer_resident else 2

    def vmem_need(tile_b):
        need = w_bufs * (pH * pV * c_isz + pH * 4)        # resident W + bias
        need += 2 * tile_b * pV * c_isz                   # x input, double-buffered
        need += 2 * tile_b * (2 * pH + pV) * o_isz        # 3 outputs, double-buffered
        need += 5 * tile_b * max(pH, pV) * 4              # f32 intermediates / casts
        return need + (2 << 20)                           # slack

    while vmem_need(tb) > vmem_cap and tb > row_align:
        tb = max(row_align, _round_up(tb // 2, row_align))
    # TODO(synk): if W itself cannot stay resident (huge H*V on v7x), a second
    #             grid axis tiling W over H with an f32 accumulator is needed.

    pB = _round_up(B, tb)
    grid = (pB // tb,)

    # Split large batch tiles into 2 independent sub-tiles inside the kernel.
    n_sub = 2 if (tb >= 128 and tb % (2 * row_align) == 0) else 1

    # Zero padding is exact: padded V columns are zero weights, padded H rows
    # have zero weight and zero bias, padded outputs are sliced off below.
    x_c = _pad2(x.astype(jnp.float32), pB, pV).astype(c_dtype)
    w_c = _pad2(w.astype(jnp.float32), pH, pV).astype(c_dtype)
    b_c = jnp.pad(b.astype(jnp.float32), (0, pH - H)).reshape(1, pH)

    cost = pl.CostEstimate(
        flops=6 * pB * pV * pH,                  # three (pB,pV)x(pV,pH)-sized matmuls
        transcendentals=2 * pB * pH,             # two sigmoids
        bytes_accessed=(x_c.size + w_c.size) * c_isz + b_c.size * 4
        + (2 * pB * pH + pB * pV) * o_isz,
    )

    vmem_limit = int(min(vmem_cap, max(2 * vmem_need(tb), 64 << 20)))

    h_p, xr_p, hr_p = pl.pallas_call(
        functools.partial(rbm_kernel, n_sub=n_sub),
        out_shape=(
            jax.ShapeDtypeStruct((pB, pH), out_dtype),
            jax.ShapeDtypeStruct((pB, pV), out_dtype),
            jax.ShapeDtypeStruct((pB, pH), out_dtype),
        ),
        grid=grid,
        in_specs=[
            pl.BlockSpec((tb, pV), lambda i: (i, 0)),              # x: tiled over batch
            _resident_spec((pH, pV), single_buffer_resident),      # W: resident, 1 buffer
            _resident_spec((1, pH), single_buffer_resident),       # b: resident, 1 buffer
        ],
        out_specs=(
            pl.BlockSpec((tb, pH), lambda i: (i, 0)),
            pl.BlockSpec((tb, pV), lambda i: (i, 0)),
            pl.BlockSpec((tb, pH), lambda i: (i, 0)),
        ),
        compiler_params=pltpu.CompilerParams(
            dimension_semantics=("parallel",),                     # shard batch on 2 TCs (v7x)
            vmem_limit_bytes=vmem_limit,
        ),
        cost_estimate=cost,
    )(x_c, w_c, b_c)

    return h_p[:B, :H], xr_p[:B, :V], hr_p[:B, :H]


def _xavier_uniform(key, shape, dtype=jnp.float32):
    # torch.nn.init.xavier_uniform_ for a Linear weight (fan_out, fan_in)
    fan_out, fan_in = shape
    limit = (6.0 / (fan_in + fan_out)) ** 0.5
    return jax.random.uniform(key, shape, dtype, minval=-limit, maxval=limit)


if __name__ == "__main__":
    key = jax.random.PRNGKey(0)
    kx, kw = jax.random.split(key)

    B, VISIBLE, HIDDEN = 8, 256, 128

    x = jax.random.normal(kx, (B, VISIBLE), dtype=jnp.float32)
    # Deterministic parameter init mimicking RBM.init_weights
    w = _xavier_uniform(kw, (HIDDEN, VISIBLE))         # Linear.weight: (H, V)
    b = jnp.full((HIDDEN,), 0.01, dtype=jnp.float32)   # Linear.bias filled with 0.01

    # Plain-JAX f32 reference (eval-mode dropout == identity)
    h_ref = jax.nn.sigmoid(x @ w.T + b)
    xr_ref = h_ref @ w
    hr_ref = jax.nn.sigmoid(xr_ref @ w.T + b)

    # 1) f32 MXU path: must match the torch-semantics reference tightly.
    h32, xr32, hr32 = jax.block_until_ready(
        rbm_forward(x, w, b, compute_dtype=jnp.float32))
    assert jnp.allclose(h32, h_ref, atol=1e-5)
    assert jnp.allclose(xr32, xr_ref, atol=1e-5)
    assert jnp.allclose(hr32, hr_ref, atol=1e-5)

    # 2) default bf16 MXU path: same semantics within bf16 rounding.
    h, x_rec, h_rec = jax.block_until_ready(rbm_forward(x, w, b))
    assert jnp.allclose(h, h_ref, atol=5e-2)
    assert jnp.allclose(x_rec, xr_ref, atol=5e-2)
    assert jnp.allclose(h_rec, hr_ref, atol=5e-2)

    # 3) bf16 outputs (halves writeback traffic for downstream bf16 consumers).
    hb, xrb, hrb = jax.block_until_ready(
        rbm_forward(x, w, b, out_dtype=jnp.bfloat16))
    assert jnp.allclose(hb.astype(jnp.float32), h_ref, atol=5e-2)

    print("KERNEL_OK")
</pallas_src>

<mosaic_0001>
module attributes {stable_mosaic.version = 11 : i64} {
  func.func @rbm_kernel(%arg0: i32, %arg1: memref<8x256xf32, #tpu.memory_space<vmem>>, %arg2: memref<128x256xf32, #tpu.memory_space<vmem>>, %arg3: memref<1x128xf32, #tpu.memory_space<vmem>>, %arg4: memref<8x128xf32, #tpu.memory_space<vmem>>, %arg5: memref<8x256xf32, #tpu.memory_space<vmem>>, %arg6: memref<8x128xf32, #tpu.memory_space<vmem>>) attributes {dimension_semantics = [#tpu.dimension_semantics<parallel>], iteration_bounds = array<i64: 1>, scalar_prefetch = 0 : i64, scratch_operands = 0 : i64, tpu.core_type = #tpu.core_type<tc>, window_params = [{transform_indices = @transform_0, window_bounds = array<i64: 8, 256>}, {pipeline_mode = #tpu.pipeline_mode<synchronous>, transform_indices = @transform_1, window_bounds = array<i64: 128, 256>}, {pipeline_mode = #tpu.pipeline_mode<synchronous>, transform_indices = @transform_2, window_bounds = array<i64: 1, 128>}, {transform_indices = @transform_3, window_bounds = array<i64: 8, 128>}, {transform_indices = @transform_4, window_bounds = array<i64: 8, 256>}, {transform_indices = @transform_5, window_bounds = array<i64: 8, 128>}]} {
    %c0 = arith.constant 0 : index
    %c0_0 = arith.constant 0 : index
    %0 = vector.load %arg2[%c0, %c0_0] : memref<128x256xf32, #tpu.memory_space<vmem>>, vector<128x256xf32>
    %c0_1 = arith.constant 0 : index
    %c0_2 = arith.constant 0 : index
    %1 = vector.load %arg3[%c0_1, %c0_2] : memref<1x128xf32, #tpu.memory_space<vmem>>, vector<1x128xf32>
    %c0_3 = arith.constant 0 : index
    %c0_4 = arith.constant 0 : index
    %2 = vector.load %arg1[%c0_3, %c0_4] : memref<8x256xf32, #tpu.memory_space<vmem>>, vector<8x256xf32>
    %cst = arith.constant dense<0.000000e+00> : vector<8x128xf32>
    %3 = tpu.matmul %2, %0, %cst {dimension_numbers = #tpu.dot_dimension_numbers<[1], [1], [0], [0], [0, 0, 1, 0], [], []>} : vector<8x256xf32>, vector<128x256xf32>, vector<8x128xf32> -> vector<8x128xf32>
    %4 = vector.broadcast %1 : vector<1x128xf32> to vector<8x128xf32>
    %5 = arith.addf %3, %4 : vector<8x128xf32>
    %6 = arith.negf %5 : vector<8x128xf32>
    %7 = math.exp %6 : vector<8x128xf32>
    %cst_5 = arith.constant 1.000000e+00 : f32
    %8 = vector.broadcast %cst_5 : f32 to vector<8x128xf32>
    %9 = arith.addf %8, %7 : vector<8x128xf32>
    %10 = arith.divf %8, %9 : vector<8x128xf32>
    %cst_6 = arith.constant dense<0.000000e+00> : vector<8x256xf32>
    %11 = tpu.matmul %10, %0, %cst_6 {dimension_numbers = #tpu.dot_dimension_numbers<[1], [0], [0], [1], [0, 0, 1, 1], [], []>} : vector<8x128xf32>, vector<128x256xf32>, vector<8x256xf32> -> vector<8x256xf32>
    %cst_7 = arith.constant dense<0.000000e+00> : vector<8x128xf32>
    %12 = tpu.matmul %11, %0, %cst_7 {dimension_numbers = #tpu.dot_dimension_numbers<[1], [1], [0], [0], [0, 0, 1, 0], [], []>} : vector<8x256xf32>, vector<128x256xf32>, vector<8x128xf32> -> vector<8x128xf32>
    %13 = vector.broadcast %1 : vector<1x128xf32> to vector<8x128xf32>
    %14 = arith.addf %12, %13 : vector<8x128xf32>
    %15 = arith.negf %14 : vector<8x128xf32>
    %16 = math.exp %15 : vector<8x128xf32>
    %cst_8 = arith.constant 1.000000e+00 : f32
    %17 = vector.broadcast %cst_8 : f32 to vector<8x128xf32>
    %18 = arith.addf %17, %16 : vector<8x128xf32>
    %19 = arith.divf %17, %18 : vector<8x128xf32>
    %c0_9 = arith.constant 0 : index
    %c0_10 = arith.constant 0 : index
    %20 = vector.load %arg4[%c0_9, %c0_10] : memref<8x128xf32, #tpu.memory_space<vmem>>, vector<8x128xf32>
    tpu.vector_store %arg4[%c0_9, %c0_10], %10 {strides = array<i32>} : memref<8x128xf32, #tpu.memory_space<vmem>>, vector<8x128xf32>,
    %c0_11 = arith.constant 0 : index
    %c0_12 = arith.constant 0 : index
    %21 = vector.load %arg5[%c0_11, %c0_12] : memref<8x256xf32, #tpu.memory_space<vmem>>, vector<8x256xf32>
    tpu.vector_store %arg5[%c0_11, %c0_12], %11 {strides = array<i32>} : memref<8x256xf32, #tpu.memory_space<vmem>>, vector<8x256xf32>,
    %c0_13 = arith.constant 0 : index
    %c0_14 = arith.constant 0 : index
    %22 = vector.load %arg6[%c0_13, %c0_14] : memref<8x128xf32, #tpu.memory_space<vmem>>, vector<8x128xf32>
    tpu.vector_store %arg6[%c0_13, %c0_14], %19 {strides = array<i32>} : memref<8x128xf32, #tpu.memory_space<vmem>>, vector<8x128xf32>,
    return
  }
  func.func @transform_0(%arg0: i32) -> (i32, i32) {
    %c0_i32 = arith.constant 0 : i32
    %c0_i32_0 = arith.constant 0 : i32
    return %arg0, %c0_i32 : i32, i32
  }
  func.func @transform_1(%arg0: i32) -> (i32, i32) {
    %c0_i32 = arith.constant 0 : i32
    %c0_i32_0 = arith.constant 0 : i32
    %c0_i32_1 = arith.constant 0 : i32
    return %c0_i32, %c0_i32_0 : i32, i32
  }
  func.func @transform_2(%arg0: i32) -> (i32, i32) {
    %c0_i32 = arith.constant 0 : i32
    %c0_i32_0 = arith.constant 0 : i32
    %c0_i32_1 = arith.constant 0 : i32
    return %c0_i32, %c0_i32_0 : i32, i32
  }
  func.func @transform_3(%arg0: i32) -> (i32, i32) {
    %c0_i32 = arith.constant 0 : i32
    %c0_i32_0 = arith.constant 0 : i32
    return %arg0, %c0_i32 : i32, i32
  }
  func.func @transform_4(%arg0: i32) -> (i32, i32) {
    %c0_i32 = arith.constant 0 : i32
    %c0_i32_0 = arith.constant 0 : i32
    return %arg0, %c0_i32 : i32, i32
  }
  func.func @transform_5(%arg0: i32) -> (i32, i32) {
    %c0_i32 = arith.constant 0 : i32
    %c0_i32_0 = arith.constant 0 : i32
    return %arg0, %c0_i32 : i32, i32
  }
}

</mosaic_0001>

<llo_original>
// kernel: rbm_forward.1
$region0: #{rbm_forward.1}
  #allocation0 [shape = 'u32[]', space=smem, size = 0x4, offset = 0x4, fixed_abs, tag = 'smem constant byte address 0x4 - core index']
  #allocation1 [shape = 'u32[144,128]{1,0:T(1,128)}', space=vmem, size = 0x12000, scoped, tag = 'internal scratch']
  %s0 = inlined_call_operand.hbm [shape: f32[8,256], index: 0, kind: input, shape index: {}]
  %s1 = inlined_call_operand.hbm [shape: f32[128,256], index: 1, kind: input, shape index: {}]
  %s2 = inlined_call_operand.hbm [shape: f32[1,128], index: 2, kind: input, shape index: {}]
  %s3 = inlined_call_operand.hbm [shape: f32[8,128], index: 3, kind: output, shape index: {0}]
  %s4 = inlined_call_operand.hbm [shape: f32[8,256], index: 4, kind: output, shape index: {1}]
  %s5 = inlined_call_operand.hbm [shape: f32[8,128], index: 5, kind: output, shape index: {2}]
  %6 = xla_tuple %s3, %s4, %s5
  %s7 = sld [smem:[#allocation0]]
  $region50: #{rbm_forward.1} parent=0
    _
  %s9 = ssub.s32 1, %s7
  %s10 = scalar_select 0, %s9, %s7
  $region1: #{rbm_forward.1} parent=0
    #allocation2 [shape = 'u8[8192]{0}', space=vmem, size = 0x2000, scoped, tag = 'input window, operand 0, single buffered']
    #allocation3 [shape = 's32[1]{0}', space=sflag, size = 0x4, scoped, tag = 'scoped memory for rbm_forward.1']
    #allocation4 [shape = 's32[1]{0}', space=sflag, size = 0x4, scoped, tag = 'scoped memory for rbm_forward.1']
    #allocation5 [shape = 'u8[131072]{0}', space=vmem, size = 0x20000, scoped, tag = 'input window, operand 1, single buffered']
    #allocation6 [shape = 's32[1]{0}', space=sflag, size = 0x4, scoped, tag = 'scoped memory for rbm_forward.1']
    #allocation7 [shape = 'u8[512]{0}', space=vmem, size = 0x400, scoped, tag = 'input window, operand 2, single buffered']
    #allocation8 [shape = 'u8[4096]{0}', space=vmem, size = 0x1000, scoped, tag = 'output window, operand 0, single buffered']
    #allocation9 [shape = 'u8[8192]{0}', space=vmem, size = 0x2000, scoped, tag = 'output window, operand 1, single buffered']
    #allocation10 [shape = 's32[1]{0}', space=sflag, size = 0x4, scoped, tag = 'scoped memory for rbm_forward.1']
    #allocation11 [shape = 'u8[4096]{0}', space=vmem, size = 0x1000, scoped, tag = 'output window, operand 2, single buffered']
    %11 = vsyncpa [#allocation3], 0
    %12 = vsyncpa [#allocation6], 0
    %13 = vsyncpa [#allocation4], 0
    %14 = vsyncpa [#allocation10], 0
    // Predicated region
    $region2: #{rbm_forward.1} parent=1 // pred_check
      _
    $region3: #{rbm_forward.1} parent=1 // pred_check_branch
      %16 = sbr.rel (0) target = $region5
    $region4: #{rbm_forward.1} parent=1 // pred_region
      %s18 = ssub.s32 256, 256
      %19 = vsyncadd [#allocation3], %s18
      %s21 = sshll.u32 [#allocation2], 4
      %s22 = int_to_ptr.vmem [resolvable:$true] %s21
      %24 = dma.hbm_to_vmem [thread:$0]  %s0, 256, %s22, [#allocation3]
    $region5: #{rbm_forward.1} parent=1 // pred_fallthru
      _
    // Predicated region
    $region6: #{rbm_forward.1} parent=1 // pred_check
      _
    $region7: #{rbm_forward.1} parent=1 // pred_check_branch
      %26 = sbr.rel (0) target = $region9
    $region8: #{rbm_forward.1} parent=1 // pred_region
      %s28 = ssub.s32 4096, 4096
      %29 = vsyncadd [#allocation6], %s28
      %s30 = sshll.u32 [#allocation5], 4
      %s31 = int_to_ptr.vmem [resolvable:$true] %s30
      %36 = dma.hbm_to_vmem [thread:$0]  %s1, 4096, %s31, [#allocation6], 256, 256, 16
    $region9: #{rbm_forward.1} parent=1 // pred_fallthru
      _
    // Predicated region
    $region10: #{rbm_forward.1} parent=1 // pred_check
      _
    $region11: #{rbm_forward.1} parent=1 // pred_check_branch
      %38 = sbr.rel (0) target = $region13
    $region12: #{rbm_forward.1} parent=1 // pred_region
      %s40 = ssub.s32 16, 16
      %41 = vsyncadd [#allocation6], %s40
      %s43 = sshll.u32 [#allocation7], 4
      %s44 = int_to_ptr.vmem [resolvable:$true] %s43
      %46 = dma.hbm_to_vmem [thread:$0]  %s2, 16, %s44, [#allocation6]
    $region13: #{rbm_forward.1} parent=1 // pred_fallthru
      _
    // Predicated region
    $region14: #{rbm_forward.1} parent=1 // pred_check
      _
    $region15: #{rbm_forward.1} parent=1 // pred_check_branch
      %48 = sbr.rel (0) target = $region17
    $region16: #{rbm_forward.1} parent=1 // pred_region
      %49 = dma.done [#allocation3], 256
    $region17: #{rbm_forward.1} parent=1 // pred_fallthru
      _
    // Predicated region
    $region18: #{rbm_forward.1} parent=1 // pred_check
      _
    $region19: #{rbm_forward.1} parent=1 // pred_check_branch
      %51 = sbr.rel (0) target = $region21
    $region20: #{rbm_forward.1} parent=1 // pred_region
      %52 = dma.done [#allocation6], 4096
    $region21: #{rbm_forward.1} parent=1 // pred_fallthru
      _
    // Predicated region
    $region22: #{rbm_forward.1} parent=1 // pred_check
      _
    $region23: #{rbm_forward.1} parent=1 // pred_check_branch
      %54 = sbr.rel (0) target = $region25
    $region24: #{rbm_forward.1} parent=1 // pred_region
      %55 = dma.done [#allocation6], 16
    $region25: #{rbm_forward.1} parent=1 // pred_fallthru
      _
    %v56 = vld [vmem:[#allocation5] sm:$0xff]
    %v57 = vld [vmem:[#allocation5 + $0x8] sm:$0xff]
    %v58 = vld [vmem:[#allocation5 + $0x10] sm:$0xff]
    %v59 = vld [vmem:[#allocation5 + $0x18] sm:$0xff]
    %v60 = vld [vmem:[#allocation5 + $0x20] sm:$0xff]
    %v61 = vld [vmem:[#allocation5 + $0x28] sm:$0xff]
    %v62 = vld [vmem:[#allocation5 + $0x30] sm:$0xff]
    %v63 = vld [vmem:[#allocation5 + $0x38] sm:$0xff]
    %v64 = vld [vmem:[#allocation5 + $0x40] sm:$0xff]
    %v65 = vld [vmem:[#allocation5 + $0x48] sm:$0xff]
    %v66 = vld [vmem:[#allocation5 + $0x50] sm:$0xff]
    %v67 = vld [vmem:[#allocation5 + $0x58] sm:$0xff]
    %v68 = vld [vmem:[#allocation5 + $0x60] sm:$0xff]
    %v69 = vld [vmem:[#allocation5 + $0x68] sm:$0xff]
    %v70 = vld [vmem:[#allocation5 + $0x70] sm:$0xff]
    %v71 = vld [vmem:[#allocation5 + $0x78] sm:$0xff]
    %v72 = vld [vmem:[#allocation5 + $0x80] sm:$0xff]
    %v73 = vld [vmem:[#allocation5 + $0x88] sm:$0xff]
    %v74 = vld [vmem:[#allocation5 + $0x90] sm:$0xff]
    %v75 = vld [vmem:[#allocation5 + $0x98] sm:$0xff]
    %v76 = vld [vmem:[#allocation5 + $0xa0] sm:$0xff]
    %v77 = vld [vmem:[#allocation5 + $0xa8] sm:$0xff]
    %v78 = vld [vmem:[#allocation5 + $0xb0] sm:$0xff]
    %v79 = vld [vmem:[#allocation5 + $0xb8] sm:$0xff]
    %v80 = vld [vmem:[#allocation5 + $0xc0] sm:$0xff]
    %v81 = vld [vmem:[#allocation5 + $0xc8] sm:$0xff]
    %v82 = vld [vmem:[#allocation5 + $0xd0] sm:$0xff]
    %v83 = vld [vmem:[#allocation5 + $0xd8] sm:$0xff]
    %v84 = vld [vmem:[#allocation5 + $0xe0] sm:$0xff]
    %v85 = vld [vmem:[#allocation5 + $0xe8] sm:$0xff]
    %v86 = vld [vmem:[#allocation5 + $0xf0] sm:$0xff]
    %v87 = vld [vmem:[#allocation5 + $0xf8] sm:$0xff]
    %v88 = vld [vmem:[#allocation7] sm:$0x1]
    %v89 = vld [vmem:[#allocation2] sm:$0xff]
    %v90 = vld [vmem:[#allocation2 + $0x8] sm:$0xff]
    %v92 = vlaneseq
    %v93 = vshrl.u32 %v92, 7
    %v94 = vsub.s32 0, %v93
    %v95 = vrot.slane %v88, %v94
    %97 = vmatprep.subr.mxu0 %v57
    %98 = vmatpush1.xpose.msra.mxu0 %v56
    %99 = vmatprep.subr.mxu0 %v59
    %100 = vmatpush1.xpose.msra.mxu0 %v58
    %101 = vmatprep.subr.mxu0 %v61
    %102 = vmatpush1.xpose.msra.mxu0 %v60
    %103 = vmatprep.subr.mxu0 %v63
    %104 = vmatpush1.xpose.msra.mxu0 %v62
    %105 = vmatprep.subr.mxu0 %v65
    %106 = vmatpush1.xpose.msra.mxu0 %v64
    %107 = vmatprep.subr.mxu0 %v67
    %108 = vmatpush1.xpose.msra.mxu0 %v66
    %109 = vmatprep.subr.mxu0 %v69
    %110 = vmatpush1.xpose.msra.mxu0 %v68
    %111 = vmatprep.subr.mxu0 %v71
    %112 = vmatpush1.xpose.msra.mxu0 %v70
    %113 = vmatprep.subr.mxu0 %v73
    %114 = vmatpush1.xpose.msra.mxu0 %v72
    %115 = vmatprep.subr.mxu0 %v75
    %116 = vmatpush1.xpose.msra.mxu0 %v74
    %117 = vmatprep.subr.mxu0 %v77
    %118 = vmatpush1.xpose.msra.mxu0 %v76
    %119 = vmatprep.subr.mxu0 %v79
    %120 = vmatpush1.xpose.msra.mxu0 %v78
    %121 = vmatprep.subr.mxu0 %v81
    %122 = vmatpush1.xpose.msra.mxu0 %v80
    %123 = vmatprep.subr.mxu0 %v83
    %124 = vmatpush1.xpose.msra.mxu0 %v82
    %125 = vmatprep.subr.mxu0 %v85
    %126 = vmatpush1.xpose.msra.mxu0 %v84
    %127 = vmatprep.subr.mxu0 %v87
    %128 = vmatpush1.xpose.msra.mxu0 %v86
    %129 = vmatprep.subr.mxu0 0.0
    %130 = vmatpush1.xpose.msra.mxu0 0.0
    %131 = vmatprep.subr.mxu0 0.0
    %132 = vmatpush1.xpose.msra.mxu0 0.0
    %133 = vmatprep.subr.mxu0 0.0
    %134 = vmatpush1.xpose.msra.mxu0 0.0
    %135 = vmatprep.subr.mxu0 0.0
    %136 = vmatpush1.xpose.msra.mxu0 0.0
    %137 = vmatprep.subr.mxu0 0.0
    %138 = vmatpush1.xpose.msra.mxu0 0.0
    %139 = vmatprep.subr.mxu0 0.0
    %140 = vmatpush1.xpose.msra.mxu0 0.0
    %141 = vmatprep.subr.mxu0 0.0
    %142 = vmatpush1.xpose.msra.mxu0 0.0
    %143 = vmatprep.subr.mxu0 0.0
    %144 = vmatpush1.xpose.msra.mxu0 0.0
    %145 = vmatprep.subr.mxu0 0.0
    %146 = vmatpush1.xpose.msra.mxu0 0.0
    %147 = vmatprep.subr.mxu0 0.0
    %148 = vmatpush1.xpose.msra.mxu0 0.0
    %149 = vmatprep.subr.mxu0 0.0
    %150 = vmatpush1.xpose.msra.mxu0 0.0
    %151 = vmatprep.subr.mxu0 0.0
    %152 = vmatpush1.xpose.msra.mxu0 0.0
    %153 = vmatprep.subr.mxu0 0.0
    %154 = vmatpush1.xpose.msra.mxu0 0.0
    %155 = vmatprep.subr.mxu0 0.0
    %156 = vmatpush1.xpose.msra.mxu0 0.0
    %157 = vmatprep.subr.mxu0 0.0
    %158 = vmatpush1.xpose.msra.mxu0 0.0
    %159 = vmatprep.subr.mxu0 0.0
    %160 = vmatpush1.xpose.msra.mxu0 0.0
    %161 = vmatprep.mubr.f32.mxu0 %v90
    %162 = vmatmul.mubr.f32.gmra.mrb[0].mxu0 %v89
    %v163 = vpop.f32.mrb[0].mxu0
    %v164 = vadd.f32 %v95, %v163
    %v165 = vpop.f32.mrb[0].mxu0
    %166 = vdwg.mxu0
    %v167 = vxor.u32 %v164, 2147483648
    %v168 = vmul.f32 %v167, 1.442695
    %v169 = vpow.pop %v168
    %v170 = vadd.f32 %v169, 1.0
    %v171 = vrcp.pop %v170
    %v172 = vmul.f32 1.0, %v171
    %173 = vmatprep.subr.mxu0 %v57
    %174 = vmatpush1.msra.mxu0 %v56
    %175 = vmatprep.subr.mxu0 %v59
    %176 = vmatpush1.msra.mxu0 %v58
    %177 = vmatprep.subr.mxu0 %v61
    %178 = vmatpush1.msra.mxu0 %v60
    %179 = vmatprep.subr.mxu0 %v63
    %180 = vmatpush1.msra.mxu0 %v62
    %181 = vmatprep.subr.mxu0 %v65
    %182 = vmatpush1.msra.mxu0 %v64
    %183 = vmatprep.subr.mxu0 %v67
    %184 = vmatpush1.msra.mxu0 %v66
    %185 = vmatprep.subr.mxu0 %v69
    %186 = vmatpush1.msra.mxu0 %v68
    %187 = vmatprep.subr.mxu0 %v71
    %188 = vmatpush1.msra.mxu0 %v70
    %189 = vmatprep.subr.mxu0 %v73
    %190 = vmatpush1.msra.mxu0 %v72
    %191 = vmatprep.subr.mxu0 %v75
    %192 = vmatpush1.msra.mxu0 %v74
    %193 = vmatprep.subr.mxu0 %v77
    %194 = vmatpush1.msra.mxu0 %v76
    %195 = vmatprep.subr.mxu0 %v79
    %196 = vmatpush1.msra.mxu0 %v78
    %197 = vmatprep.subr.mxu0 %v81
    %198 = vmatpush1.msra.mxu0 %v80
    %199 = vmatprep.subr.mxu0 %v83
    %200 = vmatpush1.msra.mxu0 %v82
    %201 = vmatprep.subr.mxu0 %v85
    %202 = vmatpush1.msra.mxu0 %v84
    %203 = vmatprep.subr.mxu0 %v87
    %204 = vmatpush1.msra.mxu0 %v86
    %205 = vmatprep.subr.mxu0 0.0
    %206 = vmatpush1.msra.mxu0 0.0
    %207 = vmatprep.subr.mxu0 0.0
    %208 = vmatpush1.msra.mxu0 0.0
    %209 = vmatprep.subr.mxu0 0.0
    %210 = vmatpush1.msra.mxu0 0.0
    %211 = vmatprep.subr.mxu0 0.0
    %212 = vmatpush1.msra.mxu0 0.0
    %213 = vmatprep.subr.mxu0 0.0
    %214 = vmatpush1.msra.mxu0 0.0
    %215 = vmatprep.subr.mxu0 0.0
    %216 = vmatpush1.msra.mxu0 0.0
    %217 = vmatprep.subr.mxu0 0.0
    %218 = vmatpush1.msra.mxu0 0.0
    %219 = vmatprep.subr.mxu0 0.0
    %220 = vmatpush1.msra.mxu0 0.0
    %221 = vmatprep.subr.mxu0 0.0
    %222 = vmatpush1.msra.mxu0 0.0
    %223 = vmatprep.subr.mxu0 0.0
    %224 = vmatpush1.msra.mxu0 0.0
    %225 = vmatprep.subr.mxu0 0.0
    %226 = vmatpush1.msra.mxu0 0.0
    %227 = vmatprep.subr.mxu0 0.0
    %228 = vmatpush1.msra.mxu0 0.0
    %229 = vmatprep.subr.mxu0 0.0
    %230 = vmatpush1.msra.mxu0 0.0
    %231 = vmatprep.subr.mxu0 0.0
    %232 = vmatpush1.msra.mxu0 0.0
    %233 = vmatprep.subr.mxu0 0.0
    %234 = vmatpush1.msra.mxu0 0.0
    %235 = vmatprep.subr.mxu0 0.0
    %236 = vmatpush1.msra.mxu0 0.0
    %237 = vmatprep.mubr.f32.mxu0 0.0
    %238 = vmatmul.mubr.f32.gmra.mrb[0].mxu0 %v172
    %v239 = vpop.f32.mrb[0].mxu0
    %v240 = vadd.f32 0.0, %v239
    %v241 = vpop.f32.mrb[0].mxu0
    %v242 = vadd.f32 0.0, %v241
    %243 = vdwg.mxu0
    %244 = vmatprep.subr.mxu0 %v57
    %245 = vmatpush1.xpose.msra.mxu0 %v56
    %246 = vmatprep.subr.mxu0 %v59
    %247 = vmatpush1.xpose.msra.mxu0 %v58
    %248 = vmatprep.subr.mxu0 %v61
    %249 = vmatpush1.xpose.msra.mxu0 %v60
    %250 = vmatprep.subr.mxu0 %v63
    %251 = vmatpush1.xpose.msra.mxu0 %v62
    %252 = vmatprep.subr.mxu0 %v65
    %253 = vmatpush1.xpose.msra.mxu0 %v64
    %254 = vmatprep.subr.mxu0 %v67
    %255 = vmatpush1.xpose.msra.mxu0 %v66
    %256 = vmatprep.subr.mxu0 %v69
    %257 = vmatpush1.xpose.msra.mxu0 %v68
    %258 = vmatprep.subr.mxu0 %v71
    %259 = vmatpush1.xpose.msra.mxu0 %v70
    %260 = vmatprep.subr.mxu0 %v73
    %261 = vmatpush1.xpose.msra.mxu0 %v72
    %262 = vmatprep.subr.mxu0 %v75
    %263 = vmatpush1.xpose.msra.mxu0 %v74
    %264 = vmatprep.subr.mxu0 %v77
    %265 = vmatpush1.xpose.msra.mxu0 %v76
    %266 = vmatprep.subr.mxu0 %v79
    %267 = vmatpush1.xpose.msra.mxu0 %v78
    %268 = vmatprep.subr.mxu0 %v81
    %269 = vmatpush1.xpose.msra.mxu0 %v80
    %270 = vmatprep.subr.mxu0 %v83
    %271 = vmatpush1.xpose.msra.mxu0 %v82
    %272 = vmatprep.subr.mxu0 %v85
    %273 = vmatpush1.xpose.msra.mxu0 %v84
    %274 = vmatprep.subr.mxu0 %v87
    %275 = vmatpush1.xpose.msra.mxu0 %v86
    %276 = vmatprep.subr.mxu0 0.0
    %277 = vmatpush1.xpose.msra.mxu0 0.0
    %278 = vmatprep.subr.mxu0 0.0
    %279 = vmatpush1.xpose.msra.mxu0 0.0
    %280 = vmatprep.subr.mxu0 0.0
    %281 = vmatpush1.xpose.msra.mxu0 0.0
    %282 = vmatprep.subr.mxu0 0.0
    %283 = vmatpush1.xpose.msra.mxu0 0.0
    %284 = vmatprep.subr.mxu0 0.0
    %285 = vmatpush1.xpose.msra.mxu0 0.0
    %286 = vmatprep.subr.mxu0 0.0
    %287 = vmatpush1.xpose.msra.mxu0 0.0
    %288 = vmatprep.subr.mxu0 0.0
    %289 = vmatpush1.xpose.msra.mxu0 0.0
    %290 = vmatprep.subr.mxu0 0.0
    %291 = vmatpush1.xpose.msra.mxu0 0.0
    %292 = vmatprep.subr.mxu0 0.0
    %293 = vmatpush1.xpose.msra.mxu0 0.0
    %294 = vmatprep.subr.mxu0 0.0
    %295 = vmatpush1.xpose.msra.mxu0 0.0
    %296 = vmatprep.subr.mxu0 0.0
    %297 = vmatpush1.xpose.msra.mxu0 0.0
    %298 = vmatprep.subr.mxu0 0.0
    %299 = vmatpush1.xpose.msra.mxu0 0.0
    %300 = vmatprep.subr.mxu0 0.0
    %301 = vmatpush1.xpose.msra.mxu0 0.0
    %302 = vmatprep.subr.mxu0 0.0
    %303 = vmatpush1.xpose.msra.mxu0 0.0
    %304 = vmatprep.subr.mxu0 0.0
    %305 = vmatpush1.xpose.msra.mxu0 0.0
    %306 = vmatprep.subr.mxu0 0.0
    %307 = vmatpush1.xpose.msra.mxu0 0.0
    %308 = vmatprep.mubr.f32.mxu0 %v242
    %309 = vmatmul.mubr.f32.gmra.mrb[0].mxu0 %v240
    %v310 = vpop.f32.mrb[0].mxu0
    %v311 = vadd.f32 %v95, %v310
    %v312 = vpop.f32.mrb[0].mxu0
    %313 = vdwg.mxu0
    %v314 = vxor.u32 %v311, 2147483648
    %v315 = vmul.f32 %v314, 1.442695
    %v316 = vpow.pop %v315
    %v317 = vadd.f32 %v316, 1.0
    %v318 = vrcp.pop %v317
    %v319 = vmul.f32 1.0, %v318
    %320 = vst [vmem:[#allocation8] sm:$0xff] %v172
    %321 = vst [vmem:[#allocation9] sm:$0xff] %v240
    %322 = vst [vmem:[#allocation9 + $0x8] sm:$0xff] %v242
    %323 = vst [vmem:[#allocation11] sm:$0xff] %v319
    // Predicated region
    $region26: #{rbm_forward.1} parent=1 // pred_check
      _
    $region27: #{rbm_forward.1} parent=1 // pred_check_branch
      %325 = sbr.rel (0) target = $region29
    $region28: #{rbm_forward.1} parent=1 // pred_region
      %s327 = ssub.s32 128, 128
      %328 = vsyncadd [#allocation4], %s327
      %s330 = sshll.u32 [#allocation8], 4
      %s331 = int_to_ptr.vmem [resolvable:$true] %s330
      %333 = dma.vmem_to_hbm [thread:$0]  %s331, 128, %s3, [#allocation4]
    $region29: #{rbm_forward.1} parent=1 // pred_fallthru
      _
    // Predicated region
    $region30: #{rbm_forward.1} parent=1 // pred_check
      _
    $region31: #{rbm_forward.1} parent=1 // pred_check_branch
      %335 = sbr.rel (0) target = $region33
    $region32: #{rbm_forward.1} parent=1 // pred_region
      %s337 = ssub.s32 256, 256
      %338 = vsyncadd [#allocation10], %s337
      %s340 = sshll.u32 [#allocation9], 4
      %s341 = int_to_ptr.vmem [resolvable:$true] %s340
      %343 = dma.vmem_to_hbm [thread:$0]  %s341, 256, %s4, [#allocation10]
    $region33: #{rbm_forward.1} parent=1 // pred_fallthru
      _
    // Predicated region
    $region34: #{rbm_forward.1} parent=1 // pred_check
      _
    $region35: #{rbm_forward.1} parent=1 // pred_check_branch
      %345 = sbr.rel (0) target = $region37
    $region36: #{rbm_forward.1} parent=1 // pred_region
      %s347 = ssub.s32 128, 128
      %348 = vsyncadd [#allocation10], %s347
      %s350 = sshll.u32 [#allocation11], 4
      %s351 = int_to_ptr.vmem [resolvable:$true] %s350
      %353 = dma.vmem_to_hbm [thread:$0]  %s351, 128, %s5, [#allocation10]
    $region37: #{rbm_forward.1} parent=1 // pred_fallthru
      _
    // Predicated region
    $region38: #{rbm_forward.1} parent=1 // pred_check
      _
    $region39: #{rbm_forward.1} parent=1 // pred_check_branch
      %355 = sbr.rel (0) target = $region41
    $region40: #{rbm_forward.1} parent=1 // pred_region
      %356 = dma.done [#allocation4], 128
    $region41: #{rbm_forward.1} parent=1 // pred_fallthru
      _
    // Predicated region
    $region42: #{rbm_forward.1} parent=1 // pred_check
      _
    $region43: #{rbm_forward.1} parent=1 // pred_check_branch
      %358 = sbr.rel (0) target = $region45
    $region44: #{rbm_forward.1} parent=1 // pred_region
      %359 = dma.done [#allocation10], 256
    $region45: #{rbm_forward.1} parent=1 // pred_fallthru
      _
    // Predicated region
    $region46: #{rbm_forward.1} parent=1 // pred_check
      _
    $region47: #{rbm_forward.1} parent=1 // pred_check_branch
      %361 = sbr.rel (0) target = $region49
    $region48: #{rbm_forward.1} parent=1 // pred_region
      %362 = dma.done [#allocation10], 128
    $region49: #{rbm_forward.1} parent=1 // pred_fallthru
      _
    %363 = vsyncpa [#allocation3], 1
    %364 = vsyncpa [#allocation6], 1
    %365 = vsyncpa [#allocation4], 1
    %366 = vsyncpa [#allocation10], 1

</llo_original>
